<compile_context>
chip_gen: v6e
topology: v6e:2x2x1
jax: 0.10.0
libtpu: 0.0.40
codegen_flags: <defaults>
</compile_context>

<pallas_src>
import functools

import jax
import jax.numpy as jnp
from jax.experimental import pallas as pl
from jax.experimental.pallas import tpu as pltpu


def _mlp_kernel(x_ref, w1_ref, b1_ref, wh_ref, bh_ref, wo_ref, bo_ref, o_ref,
                *, num_hidden):
    # First layer: Linear(F, H) + ReLU (dropout = identity in eval mode).
    # MXU accumulates in f32; bias add + ReLU stay f32 (v5e has no bf16 VPU path).
    h = jnp.dot(x_ref[...], w1_ref[...], preferred_element_type=jnp.float32)
    h = jnp.maximum(h + b1_ref[...], 0.0)

    # Hidden layers: Linear(H, H) + ReLU, statically unrolled (small, fixed count).
    for l in range(num_hidden):
        h = jnp.dot(h.astype(wh_ref.dtype), wh_ref[l],
                    preferred_element_type=jnp.float32)
        h = jnp.maximum(h + bh_ref[l], 0.0)

    # Output layer: Linear(H, 1). A [TB, H] @ [H, 1] matmul would burn a full MXU
    # pass for one output column, so do it on the VPU (mul) + XLU (lane reduce).
    out = jnp.sum(h * wo_ref[...], axis=-1, keepdims=True) + bo_ref[...]
    o_ref[...] = out.astype(o_ref.dtype)


def feedforward_pallas(x, w1, b1, wh, bh, wo, bo, *, block_b=512,
                       compute_dtype=None):
    """x: [B, F]; w1: [F, H]; b1: [1, H]; wh: [L-1, H, H]; bh: [L-1, 1, H];
    wo: [H, 1]; bo: [1, 1]  ->  [B, 1]"""
    B, F = x.shape
    H = w1.shape[1]
    L = wh.shape[0]
    out_dtype = x.dtype

    # Optional reduced-precision streaming (bf16 on v6e/v7x halves HBM traffic for
    # the x stream and uses the native bf16 MXU; accumulation stays f32).
    if compute_dtype is not None:
        x = x.astype(compute_dtype)
        w1 = w1.astype(compute_dtype)
        wh = wh.astype(compute_dtype)
    # Biases / output-layer weights stay f32: the epilogue (bias+ReLU, final VPU
    # reduce) is f32 on every generation.
    b1 = b1.astype(jnp.float32)
    bh = bh.astype(jnp.float32)
    wo_row = wo.reshape(1, H).astype(jnp.float32)
    bo = bo.reshape(1, 1).astype(jnp.float32)

    # Batch tile: resident weights + double-buffered (TB, F) input stream +
    # (TB, H) intermediates easily fit v7x's 32 MiB default scoped VMEM (the
    # tightest budget of v5e/v6e/v7x) for block_b in the 512-2048 range.
    if B <= block_b:
        tb = ((B + 7) // 8) * 8            # single block, sublane-aligned
    else:
        tb = block_b
    assert tb % 8 == 0, "batch tile must be a multiple of 8 sublanes"
    b_pad = ((B + tb - 1) // tb) * tb
    if b_pad != B:
        x = jnp.pad(x, ((0, b_pad - B), (0, 0)))
    grid = (b_pad // tb,)

    kernel = functools.partial(_mlp_kernel, num_hidden=L)

    out = pl.pallas_call(
        kernel,
        out_shape=jax.ShapeDtypeStruct((b_pad, 1), out_dtype),
        grid=grid,
        in_specs=[
            # streamed per grid step (double-buffered by the Pallas pipeline)
            pl.BlockSpec((tb, F), lambda i: (i, 0)),
            # VMEM-resident across the whole grid (constant index_map)
            pl.BlockSpec((F, H), lambda i: (0, 0)),
            pl.BlockSpec((1, H), lambda i: (0, 0)),
            pl.BlockSpec((L, H, H), lambda i: (0, 0, 0)),
            pl.BlockSpec((L, 1, H), lambda i: (0, 0, 0)),
            pl.BlockSpec((1, H), lambda i: (0, 0)),
            pl.BlockSpec((1, 1), lambda i: (0, 0)),
        ],
        out_specs=pl.BlockSpec((tb, 1), lambda i: (i, 0)),
        compiler_params=pltpu.CompilerParams(
            # Batch tiles are independent -> shard across both TCs on v7x.
            dimension_semantics=("parallel",)),
    )(x, w1, b1, wh, bh, wo_row, bo)

    return out[:B]


def _init_linear(key, fan_in, fan_out):
    # Mimic PyTorch nn.Linear default init: U(-1/sqrt(fan_in), 1/sqrt(fan_in))
    kw, kb = jax.random.split(key)
    bound = 1.0 / jnp.sqrt(jnp.float32(fan_in))
    w = jax.random.uniform(kw, (fan_in, fan_out), jnp.float32, -bound, bound)
    b = jax.random.uniform(kb, (1, fan_out), jnp.float32, -bound, bound)
    return w, b


def _reference(x, w1, b1, wh, bh, wo, bo):
    h = jnp.maximum(x @ w1 + b1, 0.0)
    for l in range(wh.shape[0]):
        h = jnp.maximum(h @ wh[l] + bh[l], 0.0)
    return h @ wo + bo


if __name__ == "__main__":
    # Module hyperparameters (small, consistent with the forward pass)
    n_features, hidden_size, layers, dropout = 32, 32, 3, 0.1
    batch = 40   # with block_b=16 below: 3 grid steps + batch padding exercised

    key = jax.random.PRNGKey(0)
    kx, k1, k2, k3 = jax.random.split(key, 4)

    x = jax.random.normal(kx, (batch, n_features), jnp.float32)

    w1, b1 = _init_linear(k1, n_features, hidden_size)

    hidden_keys = jax.random.split(k2, layers - 1)
    wh_list, bh_list = [], []
    for hk in hidden_keys:
        w, b = _init_linear(hk, hidden_size, hidden_size)
        wh_list.append(w)
        bh_list.append(b)
    wh = jnp.stack(wh_list, axis=0)           # [L-1, H, H]
    bh = jnp.stack(bh_list, axis=0)           # [L-1, 1, H]

    wo, bo = _init_linear(k3, hidden_size, 1)  # [H, 1], [1, 1]

    ref = _reference(x, w1, b1, wh, bh, wo, bo)

    # f32 path (exercises multi-step batch tiling + edge padding)
    out = feedforward_pallas(x, w1, b1, wh, bh, wo, bo, block_b=16)
    out = jax.block_until_ready(out)
    assert out.shape == (batch, 1)
    assert jnp.allclose(out, ref, atol=1e-5, rtol=1e-5)

    # bf16 streaming path (v6e/v7x): bf16 MXU inputs, f32 accumulation/epilogue
    out_bf16 = feedforward_pallas(x, w1, b1, wh, bh, wo, bo, block_b=16,
                                  compute_dtype=jnp.bfloat16)
    out_bf16 = jax.block_until_ready(out_bf16)
    assert out_bf16.shape == (batch, 1)
    assert jnp.allclose(out_bf16, ref, atol=1e-1, rtol=1e-1)

    print("KERNEL_OK")
</pallas_src>

<mosaic_0001>
module attributes {stable_mosaic.version = 11 : i64} {
  func.func @_mlp_kernel(%arg0: i32, %arg1: memref<16x32xf32, #tpu.memory_space<vmem>>, %arg2: memref<32x32xf32, #tpu.memory_space<vmem>>, %arg3: memref<1x32xf32, #tpu.memory_space<vmem>>, %arg4: memref<2x32x32xf32, #tpu.memory_space<vmem>>, %arg5: memref<2x1x32xf32, #tpu.memory_space<vmem>>, %arg6: memref<1x32xf32, #tpu.memory_space<vmem>>, %arg7: memref<1x1xf32, #tpu.memory_space<vmem>>, %arg8: memref<16x1xf32, #tpu.memory_space<vmem>>) attributes {dimension_semantics = [#tpu.dimension_semantics<parallel>], iteration_bounds = array<i64: 3>, scalar_prefetch = 0 : i64, scratch_operands = 0 : i64, tpu.core_type = #tpu.core_type<tc>, window_params = [{transform_indices = @transform_0, window_bounds = array<i64: 16, 32>}, {pipeline_mode = #tpu.pipeline_mode<synchronous>, transform_indices = @transform_1, window_bounds = array<i64: 32, 32>}, {pipeline_mode = #tpu.pipeline_mode<synchronous>, transform_indices = @transform_2, window_bounds = array<i64: 1, 32>}, {pipeline_mode = #tpu.pipeline_mode<synchronous>, transform_indices = @transform_3, window_bounds = array<i64: 2, 32, 32>}, {pipeline_mode = #tpu.pipeline_mode<synchronous>, transform_indices = @transform_4, window_bounds = array<i64: 2, 1, 32>}, {pipeline_mode = #tpu.pipeline_mode<synchronous>, transform_indices = @transform_5, window_bounds = array<i64: 1, 32>}, {pipeline_mode = #tpu.pipeline_mode<synchronous>, transform_indices = @transform_6, window_bounds = array<i64: 1, 1>}, {transform_indices = @transform_7, window_bounds = array<i64: 16, 1>}]} {
    %c0 = arith.constant 0 : index
    %c0_0 = arith.constant 0 : index
    %0 = vector.load %arg1[%c0, %c0_0] : memref<16x32xf32, #tpu.memory_space<vmem>>, vector<16x32xf32>
    %c0_1 = arith.constant 0 : index
    %c0_2 = arith.constant 0 : index
    %1 = vector.load %arg2[%c0_1, %c0_2] : memref<32x32xf32, #tpu.memory_space<vmem>>, vector<32x32xf32>
    %cst = arith.constant dense<0.000000e+00> : vector<16x32xf32>
    %2 = tpu.matmul %0, %1, %cst {dimension_numbers = #tpu.dot_dimension_numbers<[1], [0], [0], [1], [0, 0, 1, 1], [], []>} : vector<16x32xf32>, vector<32x32xf32>, vector<16x32xf32> -> vector<16x32xf32>
    %c0_3 = arith.constant 0 : index
    %c0_4 = arith.constant 0 : index
    %3 = vector.load %arg3[%c0_3, %c0_4] : memref<1x32xf32, #tpu.memory_space<vmem>>, vector<1x32xf32>
    %4 = vector.broadcast %3 : vector<1x32xf32> to vector<16x32xf32>
    %5 = arith.addf %2, %4 : vector<16x32xf32>
    %cst_5 = arith.constant 0.000000e+00 : f32
    %6 = vector.broadcast %cst_5 : f32 to vector<16x32xf32>
    %7 = arith.maximumf %5, %6 : vector<16x32xf32>
    %c0_6 = arith.constant 0 : index
    %c0_7 = arith.constant 0 : index
    %c0_8 = arith.constant 0 : index
    %8 = vector.load %arg4[%c0_6, %c0_7, %c0_8] : memref<2x32x32xf32, #tpu.memory_space<vmem>>, vector<1x32x32xf32>
    %9 = vector.shape_cast %8 : vector<1x32x32xf32> to vector<32x32xf32>
    %cst_9 = arith.constant dense<0.000000e+00> : vector<16x32xf32>
    %10 = tpu.matmul %7, %9, %cst_9 {dimension_numbers = #tpu.dot_dimension_numbers<[1], [0], [0], [1], [0, 0, 1, 1], [], []>} : vector<16x32xf32>, vector<32x32xf32>, vector<16x32xf32> -> vector<16x32xf32>
    %c0_10 = arith.constant 0 : index
    %c0_11 = arith.constant 0 : index
    %c0_12 = arith.constant 0 : index
    %11 = vector.load %arg5[%c0_10, %c0_11, %c0_12] : memref<2x1x32xf32, #tpu.memory_space<vmem>>, vector<1x1x32xf32>
    %12 = vector.shape_cast %11 : vector<1x1x32xf32> to vector<1x32xf32>
    %13 = vector.broadcast %12 : vector<1x32xf32> to vector<16x32xf32>
    %14 = arith.addf %10, %13 : vector<16x32xf32>
    %cst_13 = arith.constant 0.000000e+00 : f32
    %15 = vector.broadcast %cst_13 : f32 to vector<16x32xf32>
    %16 = arith.maximumf %14, %15 : vector<16x32xf32>
    %c1 = arith.constant 1 : index
    %c0_14 = arith.constant 0 : index
    %c0_15 = arith.constant 0 : index
    %17 = vector.load %arg4[%c1, %c0_14, %c0_15] : memref<2x32x32xf32, #tpu.memory_space<vmem>>, vector<1x32x32xf32>
    %18 = vector.shape_cast %17 : vector<1x32x32xf32> to vector<32x32xf32>
    %cst_16 = arith.constant dense<0.000000e+00> : vector<16x32xf32>
    %19 = tpu.matmul %16, %18, %cst_16 {dimension_numbers = #tpu.dot_dimension_numbers<[1], [0], [0], [1], [0, 0, 1, 1], [], []>} : vector<16x32xf32>, vector<32x32xf32>, vector<16x32xf32> -> vector<16x32xf32>
    %c1_17 = arith.constant 1 : index
    %c0_18 = arith.constant 0 : index
    %c0_19 = arith.constant 0 : index
    %20 = vector.load %arg5[%c1_17, %c0_18, %c0_19] : memref<2x1x32xf32, #tpu.memory_space<vmem>>, vector<1x1x32xf32>
    %21 = vector.shape_cast %20 : vector<1x1x32xf32> to vector<1x32xf32>
    %22 = vector.broadcast %21 : vector<1x32xf32> to vector<16x32xf32>
    %23 = arith.addf %19, %22 : vector<16x32xf32>
    %cst_20 = arith.constant 0.000000e+00 : f32
    %24 = vector.broadcast %cst_20 : f32 to vector<16x32xf32>
    %25 = arith.maximumf %23, %24 : vector<16x32xf32>
    %c0_21 = arith.constant 0 : index
    %c0_22 = arith.constant 0 : index
    %26 = vector.load %arg6[%c0_21, %c0_22] : memref<1x32xf32, #tpu.memory_space<vmem>>, vector<1x32xf32>
    %27 = vector.broadcast %26 : vector<1x32xf32> to vector<16x32xf32>
    %28 = arith.mulf %25, %27 : vector<16x32xf32>
    %cst_23 = arith.constant dense<0.000000e+00> : vector<16xf32>
    %29 = vector.multi_reduction <add>, %28, %cst_23 [1] : vector<16x32xf32> to vector<16xf32>
    %30 = vector.shape_cast %29 : vector<16xf32> to vector<16x1xf32>
    %c0_24 = arith.constant 0 : index
    %c0_25 = arith.constant 0 : index
    %31 = vector.load %arg7[%c0_24, %c0_25] : memref<1x1xf32, #tpu.memory_space<vmem>>, vector<1x1xf32>
    %32 = vector.broadcast %31 : vector<1x1xf32> to vector<16x1xf32>
    %33 = arith.addf %30, %32 : vector<16x1xf32>
    %c0_26 = arith.constant 0 : index
    %c0_27 = arith.constant 0 : index
    %34 = vector.load %arg8[%c0_26, %c0_27] : memref<16x1xf32, #tpu.memory_space<vmem>>, vector<16x1xf32>
    tpu.vector_store %arg8[%c0_26, %c0_27], %33 {strides = array<i32>} : memref<16x1xf32, #tpu.memory_space<vmem>>, vector<16x1xf32>,
    return
  }
  func.func @transform_0(%arg0: i32) -> (i32, i32) {
    %c0_i32 = arith.constant 0 : i32
    %c0_i32_0 = arith.constant 0 : i32
    return %arg0, %c0_i32 : i32, i32
  }
  func.func @transform_1(%arg0: i32) -> (i32, i32) {
    %c0_i32 = arith.constant 0 : i32
    %c0_i32_0 = arith.constant 0 : i32
    %c0_i32_1 = arith.constant 0 : i32
    return %c0_i32, %c0_i32_0 : i32, i32
  }
  func.func @transform_2(%arg0: i32) -> (i32, i32) {
    %c0_i32 = arith.constant 0 : i32
    %c0_i32_0 = arith.constant 0 : i32
    %c0_i32_1 = arith.constant 0 : i32
    return %c0_i32, %c0_i32_0 : i32, i32
  }
  func.func @transform_3(%arg0: i32) -> (i32, i32, i32) {
    %c0_i32 = arith.constant 0 : i32
    %c0_i32_0 = arith.constant 0 : i32
    %c0_i32_1 = arith.constant 0 : i32
    %c0_i32_2 = arith.constant 0 : i32
    return %c0_i32, %c0_i32_0, %c0_i32_1 : i32, i32, i32
  }
  func.func @transform_4(%arg0: i32) -> (i32, i32, i32) {
    %c0_i32 = arith.constant 0 : i32
    %c0_i32_0 = arith.constant 0 : i32
    %c0_i32_1 = arith.constant 0 : i32
    %c0_i32_2 = arith.constant 0 : i32
    return %c0_i32, %c0_i32_0, %c0_i32_1 : i32, i32, i32
  }
  func.func @transform_5(%arg0: i32) -> (i32, i32) {
    %c0_i32 = arith.constant 0 : i32
    %c0_i32_0 = arith.constant 0 : i32
    %c0_i32_1 = arith.constant 0 : i32
    return %c0_i32, %c0_i32_0 : i32, i32
  }
  func.func @transform_6(%arg0: i32) -> (i32, i32) {
    %c0_i32 = arith.constant 0 : i32
    %c0_i32_0 = arith.constant 0 : i32
    %c0_i32_1 = arith.constant 0 : i32
    return %c0_i32, %c0_i32_0 : i32, i32
  }
  func.func @transform_7(%arg0: i32) -> (i32, i32) {
    %c0_i32 = arith.constant 0 : i32
    %c0_i32_0 = arith.constant 0 : i32
    return %arg0, %c0_i32 : i32, i32
  }
}

</mosaic_0001>

<llo_original>
// kernel: tpu_custom_call.1
$region0: #{tpu_custom_call.1}
  #allocation0 [shape = 'u32[]', space=smem, size = 0x4, offset = 0x4, fixed_abs, tag = 'smem constant byte address 0x4 - core index']
  #allocation1 [shape = 'u32[144,128]{1,0:T(1,128)}', space=vmem, size = 0x12000, scoped, tag = 'internal scratch']
  #allocation2 [shape = 'f32[1,1]{1,0:T(1,128)S(1)}', space=vmem, size = 0x200, scoped, tag = 'scoped memory for tpu_custom_call.1']
  %s0 = inlined_call_operand.vmem [shape: f32[48,32], index: 0, kind: input, shape index: {}]
  %s1 = inlined_call_operand.hbm [shape: f32[32,32], index: 1, kind: input, shape index: {}]
  %s2 = inlined_call_operand.vmem [shape: f32[1,32], index: 2, kind: input, shape index: {}]
  %s3 = inlined_call_operand.vmem [shape: f32[2,32,32], index: 3, kind: input, shape index: {}]
  %s4 = inlined_call_operand.vmem [shape: f32[2,1,32], index: 4, kind: input, shape index: {}]
  %s5 = inlined_call_operand.vmem [shape: f32[1,32], index: 5, kind: input, shape index: {}]
  %s6 = inlined_call_operand.<no memory space> [shape: f32[1,1], index: 6, kind: input, shape index: {}]
  %s7 = inlined_call_operand.vmem [shape: f32[48,1], index: 7, kind: output, shape index: {}]
  %s8 = sld [smem:[#allocation0]]
  $region65: #{tpu_custom_call.1} parent=0
    _
  %s10 = ssub.s32 1, %s8
  %s11 = scalar_select 0, %s10, %s8
  %v12 = vstv %s6
  %13 = vst [vmem:[#allocation2] sm:$0x1] %v12
  $region1: #{tpu_custom_call.1} parent=0
    #allocation3 [shape = 'u8[16384]{0}', space=vmem, size = 0x4000, scoped, tag = 'input window, operand 1, single buffered']
    #allocation4 [shape = 's32[2]{0}', space=sflag, size = 0x8, scoped, tag = 'scoped memory for tpu_custom_call.1']
    %14 = vsyncpa [#allocation4], 0
    loop: start=0, step=1, limit=5
    $region2: #{tpu_custom_call.1} parent=1 // loop_pre_header
      _
    $region3: #{tpu_custom_call.1} parent=1 // loop_header
      %s16 = sphi 0, %s20
      %p17 = scmp.ge.s32.totalorder %s16, 5
      %s26 = sphi 0, %s28
      %s29 = sphi 0, %s26
      %s30 = sphi 0, %s29
      %s46 = sphi 0, %s30
      %s50 = sphi 0, %s50
      %s52 = sphi 0, %s50
      %s53 = sphi 0, %s52
      %s67 = sphi 0, %s53
      %s71 = sphi 0, %s71
      %s73 = sphi 0, %s71
      %s74 = sphi 0, %s73
      %s88 = sphi 0, %s74
      %s92 = sphi 0, %s92
      %s94 = sphi 0, %s92
      %s95 = sphi 0, %s94
      %s109 = sphi 0, %s95
      %s113 = sphi 0, %s113
      %s115 = sphi 0, %s113
      %s116 = sphi 0, %s115
      %s130 = sphi 0, %s116
      %s134 = sphi 0, %s134
      %s136 = sphi 0, %s134
      %s137 = sphi 0, %s136
      %s151 = sphi 0, %s137
      %s155 = sphi 0, %s155
      %s157 = sphi 0, %s155
      %s158 = sphi 0, %s157
      %s172 = sphi 0, %s158
      %s178 = sphi 0, %s180
      %s181 = sphi 0, %s178
      %s182 = sphi 0, %s181
      %s198 = sphi 0, %s182
    $region4: #{tpu_custom_call.1} parent=1 // loop_header_branch
      %19 = sbr.rel (%p17) target = $region8
    $region5: #{tpu_custom_call.1} parent=1 // loop_body
      %s21 = ssub.s32 %s16, 1
      %s22 = ssub.s32 %s16, 2
      %s23 = sadd.s32 %s16, 1
      %s24 = ssub.s32 %s16, %s23
      %p25 = scmp.eq.s32.totalorder %s24, 0
      %s27 = sadd.s32 %s26, 1
      %s28 = scalar_select %p25, %s26, %s27
      %p31 = pneg %p25
      %p32 = scmp.eq.s32.totalorder %s16, 2
      %p33 = por %p31, %p32
      %p34 = scmp.ne.s32.totalorder %s26, %s29
      %p35 = scmp.eq.s32.totalorder %s16, 0
      %p36 = por %p34, %p35
      %p37 = scmp.ne.s32.totalorder %s26, %s29
      %p38 = scmp.eq.s32.totalorder %s21, 2
      %p39 = por %p37, %p38
      %p40 = scmp.ne.s32.totalorder %s29, %s30
      %p41 = scmp.eq.s32.totalorder %s21, 0
      %p42 = por %p40, %p41
      %p43 = scmp.ne.s32.totalorder %s29, %s30
      %p44 = scmp.eq.s32.totalorder %s22, 2
      %p45 = por %p43, %p44
      %p47 = scmp.ne.s32.totalorder %s30, %s46
      %p48 = scmp.eq.s32.totalorder %s22, 0
      %p49 = por %p47, %p48
      %s51 = sadd.s32 %s50, 1
      %p54 = scmp.eq.s32.totalorder %s16, 2
      %p55 = scmp.ne.s32.totalorder %s50, %s52
      %p56 = scmp.eq.s32.totalorder %s16, 0
      %p57 = por %p55, %p56
      %p58 = scmp.ne.s32.totalorder %s50, %s52
      %p59 = scmp.eq.s32.totalorder %s21, 2
      %p60 = por %p58, %p59
      %p61 = scmp.ne.s32.totalorder %s52, %s53
      %p62 = scmp.eq.s32.totalorder %s21, 0
      %p63 = por %p61, %p62
      %p64 = scmp.ne.s32.totalorder %s52, %s53
      %p65 = scmp.eq.s32.totalorder %s22, 2
      %p66 = por %p64, %p65
      %p68 = scmp.ne.s32.totalorder %s53, %s67
      %p69 = scmp.eq.s32.totalorder %s22, 0
      %p70 = por %p68, %p69
      %s72 = sadd.s32 %s71, 1
      %p75 = scmp.eq.s32.totalorder %s16, 2
      %p76 = scmp.ne.s32.totalorder %s71, %s73
      %p77 = scmp.eq.s32.totalorder %s16, 0
      %p78 = por %p76, %p77
      %p79 = scmp.ne.s32.totalorder %s71, %s73
      %p80 = scmp.eq.s32.totalorder %s21, 2
      %p81 = por %p79, %p80
      %p82 = scmp.ne.s32.totalorder %s73, %s74
      %p83 = scmp.eq.s32.totalorder %s21, 0
      %p84 = por %p82, %p83
      %p85 = scmp.ne.s32.totalorder %s73, %s74
      %p86 = scmp.eq.s32.totalorder %s22, 2
      %p87 = por %p85, %p86
      %p89 = scmp.ne.s32.totalorder %s74, %s88
      %p90 = scmp.eq.s32.totalorder %s22, 0
      %p91 = por %p89, %p90
      %s93 = sadd.s32 %s92, 1
      %p96 = scmp.eq.s32.totalorder %s16, 2
      %p97 = scmp.ne.s32.totalorder %s92, %s94
      %p98 = scmp.eq.s32.totalorder %s16, 0
      %p99 = por %p97, %p98
      %p100 = scmp.ne.s32.totalorder %s92, %s94
      %p101 = scmp.eq.s32.totalorder %s21, 2
      %p102 = por %p100, %p101
      %p103 = scmp.ne.s32.totalorder %s94, %s95
      %p104 = scmp.eq.s32.totalorder %s21, 0
      %p105 = por %p103, %p104
      %p106 = scmp.ne.s32.totalorder %s94, %s95
      %p107 = scmp.eq.s32.totalorder %s22, 2
      %p108 = por %p106, %p107
      %p110 = scmp.ne.s32.totalorder %s95, %s109
      %p111 = scmp.eq.s32.totalorder %s22, 0
      %p112 = por %p110, %p111
      %s114 = sadd.s32 %s113, 1
      %p117 = scmp.eq.s32.totalorder %s16, 2
      %p118 = scmp.ne.s32.totalorder %s113, %s115
      %p119 = scmp.eq.s32.totalorder %s16, 0
      %p120 = por %p118, %p119
      %p121 = scmp.ne.s32.totalorder %s113, %s115
      %p122 = scmp.eq.s32.totalorder %s21, 2
      %p123 = por %p121, %p122
      %p124 = scmp.ne.s32.totalorder %s115, %s116
      %p125 = scmp.eq.s32.totalorder %s21, 0
      %p126 = por %p124, %p125
      %p127 = scmp.ne.s32.totalorder %s115, %s116
      %p128 = scmp.eq.s32.totalorder %s22, 2
      %p129 = por %p127, %p128
      %p131 = scmp.ne.s32.totalorder %s116, %s130
      %p132 = scmp.eq.s32.totalorder %s22, 0
      %p133 = por %p131, %p132
      %s135 = sadd.s32 %s134, 1
      %p138 = scmp.eq.s32.totalorder %s16, 2
      %p139 = scmp.ne.s32.totalorder %s134, %s136
      %p140 = scmp.eq.s32.totalorder %s16, 0
      %p141 = por %p139, %p140
      %p142 = scmp.ne.s32.totalorder %s134, %s136
      %p143 = scmp.eq.s32.totalorder %s21, 2
      %p144 = por %p142, %p143
      %p145 = scmp.ne.s32.totalorder %s136, %s137
      %p146 = scmp.eq.s32.totalorder %s21, 0
      %p147 = por %p145, %p146
      %p148 = scmp.ne.s32.totalorder %s136, %s137
      %p149 = scmp.eq.s32.totalorder %s22, 2
      %p150 = por %p148, %p149
      %p152 = scmp.ne.s32.totalorder %s137, %s151
      %p153 = scmp.eq.s32.totalorder %s22, 0
      %p154 = por %p152, %p153
      %s156 = sadd.s32 %s155, 1
      %p159 = scmp.eq.s32.totalorder %s16, 2
      %p160 = scmp.ne.s32.totalorder %s155, %s157
      %p161 = scmp.eq.s32.totalorder %s16, 0
      %p162 = por %p160, %p161
      %p163 = scmp.ne.s32.totalorder %s155, %s157
      %p164 = scmp.eq.s32.totalorder %s21, 2
      %p165 = por %p163, %p164
      %p166 = scmp.ne.s32.totalorder %s157, %s158
      %p167 = scmp.eq.s32.totalorder %s21, 0
      %p168 = por %p166, %p167
      %p169 = scmp.ne.s32.totalorder %s157, %s158
      %p170 = scmp.eq.s32.totalorder %s22, 2
      %p171 = por %p169, %p170
      %p173 = scmp.ne.s32.totalorder %s158, %s172
      %p174 = scmp.eq.s32.totalorder %s22, 0
      %p175 = por %p173, %p174
      %s176 = ssub.s32 %s16, %s23
      %p177 = scmp.eq.s32.totalorder %s176, 0
      %s179 = sadd.s32 %s178, 1
      %s180 = scalar_select %p177, %s178, %s179
      %p183 = pneg %p177
      %p184 = scmp.eq.s32.totalorder %s16, 2
      %p185 = por %p183, %p184
      %p186 = scmp.ne.s32.totalorder %s178, %s181
      %p187 = scmp.eq.s32.totalorder %s16, 0
      %p188 = por %p186, %p187
      %p189 = scmp.ne.s32.totalorder %s178, %s181
      %p190 = scmp.eq.s32.totalorder %s21, 2
      %p191 = por %p189, %p190
      %p192 = scmp.ne.s32.totalorder %s181, %s182
      %p193 = scmp.eq.s32.totalorder %s21, 0
      %p194 = por %p192, %p193
      %p195 = scmp.ne.s32.totalorder %s181, %s182
      %p196 = scmp.eq.s32.totalorder %s22, 2
      %p197 = por %p195, %p196
      %p199 = scmp.ne.s32.totalorder %s182, %s198
      %p200 = scmp.eq.s32.totalorder %s22, 0
      %p201 = por %p199, %p200
      %p202 = scmp.le.s32.totalorder 1, %s16
      %p203 = scmp.lt.s32.totalorder %s16, 4
      %p204 = pnand %p202, %p203
      %p205 = pneg %p204
      // Predicated region
      $region9: #{tpu_custom_call.1} parent=5 // pred_check
        _
      $region10: #{tpu_custom_call.1} parent=5 // pred_check_branch
        %207 = sbr.rel (%p204) target = $region12
      $region11: #{tpu_custom_call.1} parent=5 // pred_region
        %s208 = ssub.s32 %s16, 1
        // Predicated region
        $region13: #{tpu_custom_call.1} parent=11 // pred_check
          %p209 = pneg %p63
        $region14: #{tpu_custom_call.1} parent=11 // pred_check_branch
          %211 = sbr.rel (%p209) target = $region16
        $region15: #{tpu_custom_call.1} parent=11 // pred_region
          %s213 = ssub.s32 512, 512
          %214 = vsyncadd [#allocation4], %s213
          %s215 = sshll.u32 [#allocation3], 4
          %s216 = int_to_ptr.vmem [resolvable:$true] %s215
          %221 = dma.hbm_to_vmem [thread:$0]  %s1, 512, %s216, [#allocation4], 128, 128, 8
        $region16: #{tpu_custom_call.1} parent=11 // pred_fallthru
          _
        // Predicated region
        $region17: #{tpu_custom_call.1} parent=11 // pred_check
          %p222 = pneg %p84
        $region18: #{tpu_custom_call.1} parent=11 // pred_check_branch
          %224 = sbr.rel (%p222) target = $region20
        $region19: #{tpu_custom_call.1} parent=11 // pred_region
          _
        $region20: #{tpu_custom_call.1} parent=11 // pred_fallthru
          _
        // Predicated region
        $region21: #{tpu_custom_call.1} parent=11 // pred_check
          %p225 = pneg %p105
        $region22: #{tpu_custom_call.1} parent=11 // pred_check_branch
          %227 = sbr.rel (%p225) target = $region24
        $region23: #{tpu_custom_call.1} parent=11 // pred_region
          _
        $region24: #{tpu_custom_call.1} parent=11 // pred_fallthru
          _
        // Predicated region
        $region25: #{tpu_custom_call.1} parent=11 // pred_check
          %p228 = pneg %p126
        $region26: #{tpu_custom_call.1} parent=11 // pred_check_branch
          %230 = sbr.rel (%p228) target = $region28
        $region27: #{tpu_custom_call.1} parent=11 // pred_region
          _
        $region28: #{tpu_custom_call.1} parent=11 // pred_fallthru
          _
        // Predicated region
        $region29: #{tpu_custom_call.1} parent=11 // pred_check
          %p231 = pneg %p147
        $region30: #{tpu_custom_call.1} parent=11 // pred_check_branch
          %233 = sbr.rel (%p231) target = $region32
        $region31: #{tpu_custom_call.1} parent=11 // pred_region
          _
        $region32: #{tpu_custom_call.1} parent=11 // pred_fallthru
          _
        // Predicated region
        $region33: #{tpu_custom_call.1} parent=11 // pred_check
          %p234 = pneg %p168
        $region34: #{tpu_custom_call.1} parent=11 // pred_check_branch
          %236 = sbr.rel (%p234) target = $region36
        $region35: #{tpu_custom_call.1} parent=11 // pred_region
          _
        $region36: #{tpu_custom_call.1} parent=11 // pred_fallthru
          _
      $region12: #{tpu_custom_call.1} parent=5 // pred_fallthru
        _
      %p237 = scmp.lt.s32.totalorder %s16, 3
      // Predicated region
      $region37: #{tpu_custom_call.1} parent=5 // pred_check
        %p238 = pneg %p237
      $region38: #{tpu_custom_call.1} parent=5 // pred_check_branch
        %240 = sbr.rel (%p238) target = $region40
      $region39: #{tpu_custom_call.1} parent=5 // pred_region
        // Predicated region
        $region41: #{tpu_custom_call.1} parent=39 // pred_check
          %p241 = pneg %p36
        $region42: #{tpu_custom_call.1} parent=39 // pred_check_branch
          %243 = sbr.rel (%p241) target = $region44
        $region43: #{tpu_custom_call.1} parent=39 // pred_region
          %s244 = smul.u32 2, %s16
          %p245 = scmp.lt.s32.totalorder %s244, 5
          %s246 = scalar_select %p245, %s244, 5
          %s247 = smul.addr %s246, 8
          %s248 = scalar_lea.vmem %s0, %s247
          %s249 = smul.u32 2, %s16
        $region44: #{tpu_custom_call.1} parent=39 // pred_fallthru
          _
      $region40: #{tpu_custom_call.1} parent=5 // pred_fallthru
        _
      %p250 = scmp.le.s32.totalorder 1, %s16
      %p251 = scmp.lt.s32.totalorder %s16, 4
      %p252 = pnand %p250, %p251
      %p253 = pneg %p252
      // Predicated region
      $region45: #{tpu_custom_call.1} parent=5 // pred_check
        _
      $region46: #{tpu_custom_call.1} parent=5 // pred_check_branch
        %255 = sbr.rel (%p252) target = $region48
      $region47: #{tpu_custom_call.1} parent=5 // pred_region
        %s256 = ssub.s32 %s16, 1
        // Predicated region
        $region49: #{tpu_custom_call.1} parent=47 // pred_check
          %p257 = pneg %p63
        $region50: #{tpu_custom_call.1} parent=47 // pred_check_branch
          %259 = sbr.rel (%p257) target = $region52
        $region51: #{tpu_custom_call.1} parent=47 // pred_region
          %260 = dma.done [#allocation4], 512
        $region52: #{tpu_custom_call.1} parent=47 // pred_fallthru
          _
        %s261 = smul.u32 2, %s21
        %p262 = scmp.lt.s32.totalorder %s261, 5
        %s263 = scalar_select %p262, %s261, 5
        %s264 = smul.addr %s263, 8
        %s265 = scalar_lea.vmem %s0, %s264
        %p266 = pneg %p42
        %p267 = pneg %p39
        %p268 = pneg %p63
        %p269 = pneg %p60
        %p270 = pneg %p84
        %p271 = pneg %p81
        %p272 = pneg %p105
        %p273 = pneg %p102
        %p274 = pneg %p126
        %p275 = pneg %p123
        %p276 = pneg %p147
        %p277 = pneg %p144
        %p278 = pneg %p168
        %p279 = pneg %p165
        %p280 = pneg %p194
        %p281 = pneg %p191
        %s282 = smul.u32 2, %s21
        %p283 = scmp.lt.s32.totalorder %s282, 5
        %s284 = scalar_select %p283, %s282, 5
        %s285 = smul.addr %s284, 8
        %s286 = scalar_lea.vmem %s7, %s285
        %s287 = smul.u32 2, %s21
        %p288 = scmp.lt.s32.totalorder %s287, 5
        %s289 = scalar_select %p288, %s287, 5
        %s290 = smul.addr %s289, 8
        %s291 = scalar_lea.vmem %s0, %s290
        %s292 = smul.u32 2, %s21
        %s293 = smul.u32 2, %s21
        %p294 = scmp.lt.s32.totalorder %s293, 5
        %s295 = scalar_select %p294, %s293, 5
        %s296 = smul.addr %s295, 8
        %s297 = scalar_lea.vmem %s7, %s296
        %s298 = smul.u32 2, %s21
        %v299 = vld [vmem:[%s291] sm:$0xff]
        %v300 = vld [vmem:[%s291 + $0x8] sm:$0xff]
        %v301 = vld [vmem:[#allocation3] sm:$0xff]
        %v302 = vld [vmem:[#allocation3 + $0x8] sm:$0xff]
        %v303 = vld [vmem:[#allocation3 + $0x10] sm:$0xff]
        %v304 = vld [vmem:[#allocation3 + $0x18] sm:$0xff]
        %v305 = vld [vmem:[%s2] sm:$0x1]
        %v307 = vlaneseq
        %v308 = vshrl.u32 %v307, 7
        %v309 = vsub.s32 0, %v308
        %v310 = vrot.slane %v305, %v309
        %vm312 = vcmask 261120
        %v314 = vsel %vm312, %v299, 0
        %v317 = vsel %vm312, %v300, 0
        %319 = vmatprep.subr.mxu0 0.0
        %320 = vmatpush1.msra.mxu0 0.0
        %321 = vmatprep.subr.mxu0 0.0
        %322 = vmatpush1.msra.mxu0 0.0
        %323 = vmatprep.subr.mxu0 0.0
        %324 = vmatpush1.msra.mxu0 0.0
        %325 = vmatprep.subr.mxu0 0.0
        %326 = vmatpush1.msra.mxu0 0.0
        %327 = vmatprep.subr.mxu0 0.0
        %328 = vmatpush1.msra.mxu0 0.0
        %329 = vmatprep.subr.mxu0 0.0
        %330 = vmatpush1.msra.mxu0 0.0
        %331 = vmatprep.subr.mxu0 0.0
        %332 = vmatpush1.msra.mxu0 0.0
        %333 = vmatprep.subr.mxu0 0.0
        %334 = vmatpush1.msra.mxu0 0.0
        %335 = vmatprep.subr.mxu0 0.0
        %336 = vmatpush1.msra.mxu0 0.0
        %337 = vmatprep.subr.mxu0 0.0
        %338 = vmatpush1.msra.mxu0 0.0
        %339 = vmatprep.subr.mxu0 0.0
        %340 = vmatpush1.msra.mxu0 0.0
        %341 = vmatprep.subr.mxu0 0.0
        %342 = vmatpush1.msra.mxu0 0.0
        %343 = vmatprep.subr.mxu0 0.0
        %344 = vmatpush1.msra.mxu0 %v304
        %345 = vmatprep.subr.mxu0 0.0
        %346 = vmatpush1.msra.mxu0 %v303
        %347 = vmatprep.subr.mxu0 0.0
        %348 = vmatpush1.msra.mxu0 %v302
        %349 = vmatprep.subr.mxu0 0.0
        %350 = vmatpush1.msra.mxu0 %v301
        %351 = vmatprep.subr.mxu0 0.0
        %352 = vmatpush2.msra.mxu0 0.0
        %353 = vmatprep.subr.mxu0 0.0
        %354 = vmatpush2.msra.mxu0 0.0
        %355 = vmatprep.subr.mxu0 0.0
        %356 = vmatpush2.msra.mxu0 0.0
        %357 = vmatprep.subr.mxu0 0.0
        %358 = vmatpush2.msra.mxu0 0.0
        %359 = vmatprep.subr.mxu0 0.0
        %360 = vmatpush2.msra.mxu0 0.0
        %361 = vmatprep.subr.mxu0 0.0
        %362 = vmatpush2.msra.mxu0 0.0
        %363 = vmatprep.subr.mxu0 0.0
        %364 = vmatpush2.msra.mxu0 0.0
        %365 = vmatprep.subr.mxu0 0.0
        %366 = vmatpush2.msra.mxu0 0.0
        %367 = vmatprep.subr.mxu0 0.0
        %368 = vmatpush2.msra.mxu0 0.0
        %369 = vmatprep.subr.mxu0 0.0
        %370 = vmatpush2.msra.mxu0 0.0
        %371 = vmatprep.subr.mxu0 0.0
        %372 = vmatpush2.msra.mxu0 0.0
        %373 = vmatprep.subr.mxu0 0.0
        %374 = vmatpush2.msra.mxu0 0.0
        %375 = vmatprep.subr.mxu0 0.0
        %376 = vmatpush2.msra.mxu0 0.0
        %377 = vmatprep.subr.mxu0 0.0
        %378 = vmatpush2.msra.mxu0 0.0
        %379 = vmatprep.subr.mxu0 0.0
        %380 = vmatpush2.msra.mxu0 0.0
        %381 = vmatprep.subr.mxu0 0.0
        %382 = vmatpush2.msra.mxu0 0.0
        %383 = vmatprep.mubr.f32.mxu0 0.0
        %384 = vmatmul.mubr.f32.gmra.mxu0 %v314
        %v385 = vpop.f32.mrf.mxu0
        %v386 = vadd.f32 %v310, %v385
        %v387 = vpop.f32.mrf.mxu0
        %388 = vmatprep.mubr.f32.mxu0 0.0
        %389 = vmatmul.mubr.f32.gmra.mxu0 %v317
        %v390 = vpop.f32.mrf.mxu0
        %v391 = vadd.f32 %v310, %v390
        %v392 = vpop.f32.mrf.mxu0
        %393 = vdwg.mxu0
        %v394 = vmax.f32 %v386, 0.0
        %v395 = vmax.f32 %v391, 0.0
        %v396 = vld [vmem:[%s3] sm:$0xff]
        %v397 = vld [vmem:[%s3 + $0x8] sm:$0xff]
        %v398 = vld [vmem:[%s3 + $0x10] sm:$0xff]
        %v399 = vld [vmem:[%s3 + $0x18] sm:$0xff]
        %v400 = vld [vmem:[%s4] sm:$0x1]
        %v402 = vlaneseq
        %v403 = vshrl.u32 %v402, 7
        %v404 = vsub.s32 0, %v403
        %v405 = vrot.slane %v400, %v404
        %v408 = vsel %vm312, %v394, 0
        %v411 = vsel %vm312, %v395, 0
        %413 = vmatprep.subr.mxu0 0.0
        %414 = vmatpush1.msra.mxu0 0.0
        %415 = vmatprep.subr.mxu0 0.0
        %416 = vmatpush1.msra.mxu0 0.0
        %417 = vmatprep.subr.mxu0 0.0
        %418 = vmatpush1.msra.mxu0 0.0
        %419 = vmatprep.subr.mxu0 0.0
        %420 = vmatpush1.msra.mxu0 0.0
        %421 = vmatprep.subr.mxu0 0.0
        %422 = vmatpush1.msra.mxu0 0.0
        %423 = vmatprep.subr.mxu0 0.0
        %424 = vmatpush1.msra.mxu0 0.0
        %425 = vmatprep.subr.mxu0 0.0
        %426 = vmatpush1.msra.mxu0 0.0
        %427 = vmatprep.subr.mxu0 0.0
        %428 = vmatpush1.msra.mxu0 0.0
        %429 = vmatprep.subr.mxu0 0.0
        %430 = vmatpush1.msra.mxu0 0.0
        %431 = vmatprep.subr.mxu0 0.0
        %432 = vmatpush1.msra.mxu0 0.0
        %433 = vmatprep.subr.mxu0 0.0
        %434 = vmatpush1.msra.mxu0 0.0
        %435 = vmatprep.subr.mxu0 0.0
        %436 = vmatpush1.msra.mxu0 0.0
        %437 = vmatprep.subr.mxu0 0.0
        %438 = vmatpush1.msra.mxu0 %v399
        %439 = vmatprep.subr.mxu0 0.0
        %440 = vmatpush1.msra.mxu0 %v398
        %441 = vmatprep.subr.mxu0 0.0
        %442 = vmatpush1.msra.mxu0 %v397
        %443 = vmatprep.subr.mxu0 0.0
        %444 = vmatpush1.msra.mxu0 %v396
        %445 = vmatprep.subr.mxu0 0.0
        %446 = vmatpush2.msra.mxu0 0.0
        %447 = vmatprep.subr.mxu0 0.0
        %448 = vmatpush2.msra.mxu0 0.0
        %449 = vmatprep.subr.mxu0 0.0
        %450 = vmatpush2.msra.mxu0 0.0
        %451 = vmatprep.subr.mxu0 0.0
        %452 = vmatpush2.msra.mxu0 0.0
        %453 = vmatprep.subr.mxu0 0.0
        %454 = vmatpush2.msra.mxu0 0.0
        %455 = vmatprep.subr.mxu0 0.0
        %456 = vmatpush2.msra.mxu0 0.0
        %457 = vmatprep.subr.mxu0 0.0
        %458 = vmatpush2.msra.mxu0 0.0
        %459 = vmatprep.subr.mxu0 0.0
        %460 = vmatpush2.msra.mxu0 0.0
        %461 = vmatprep.subr.mxu0 0.0
        %462 = vmatpush2.msra.mxu0 0.0
        %463 = vmatprep.subr.mxu0 0.0
        %464 = vmatpush2.msra.mxu0 0.0
        %465 = vmatprep.subr.mxu0 0.0
        %466 = vmatpush2.msra.mxu0 0.0
        %467 = vmatprep.subr.mxu0 0.0
        %468 = vmatpush2.msra.mxu0 0.0
        %469 = vmatprep.subr.mxu0 0.0
        %470 = vmatpush2.msra.mxu0 0.0
        %471 = vmatprep.subr.mxu0 0.0
        %472 = vmatpush2.msra.mxu0 0.0
        %473 = vmatprep.subr.mxu0 0.0
        %474 = vmatpush2.msra.mxu0 0.0
        %475 = vmatprep.subr.mxu0 0.0
        %476 = vmatpush2.msra.mxu0 0.0
        %477 = vmatprep.mubr.f32.mxu0 0.0
        %478 = vmatmul.mubr.f32.gmra.mxu0 %v408
        %v479 = vpop.f32.mrf.mxu0
        %v480 = vadd.f32 %v405, %v479
        %v481 = vpop.f32.mrf.mxu0
        %482 = vmatprep.mubr.f32.mxu0 0.0
        %483 = vmatmul.mubr.f32.gmra.mxu0 %v411
        %v484 = vpop.f32.mrf.mxu0
        %v485 = vadd.f32 %v405, %v484
        %v486 = vpop.f32.mrf.mxu0
        %487 = vdwg.mxu0
        %v488 = vmax.f32 %v480, 0.0
        %v489 = vmax.f32 %v485, 0.0
        %s490 = scalar_lea.vmem %s3, 32
        %v491 = vld [vmem:[%s490] sm:$0xff]
        %v492 = vld [vmem:[%s490 + $0x8] sm:$0xff]
        %v493 = vld [vmem:[%s490 + $0x10] sm:$0xff]
        %v494 = vld [vmem:[%s490 + $0x18] sm:$0xff]
        %s495 = scalar_lea.vmem %s4, 1
        %v496 = vld [vmem:[%s495] sm:$0x1]
        %v498 = vlaneseq
        %v499 = vshrl.u32 %v498, 7
        %v500 = vsub.s32 0, %v499
        %v501 = vrot.slane %v496, %v500
        %v504 = vsel %vm312, %v488, 0
        %v507 = vsel %vm312, %v489, 0
        %509 = vmatprep.subr.mxu0 0.0
        %510 = vmatpush1.msra.mxu0 0.0
        %511 = vmatprep.subr.mxu0 0.0
        %512 = vmatpush1.msra.mxu0 0.0
        %513 = vmatprep.subr.mxu0 0.0
        %514 = vmatpush1.msra.mxu0 0.0
        %515 = vmatprep.subr.mxu0 0.0
        %516 = vmatpush1.msra.mxu0 0.0
        %517 = vmatprep.subr.mxu0 0.0
        %518 = vmatpush1.msra.mxu0 0.0
        %519 = vmatprep.subr.mxu0 0.0
        %520 = vmatpush1.msra.mxu0 0.0
        %521 = vmatprep.subr.mxu0 0.0
        %522 = vmatpush1.msra.mxu0 0.0
        %523 = vmatprep.subr.mxu0 0.0
        %524 = vmatpush1.msra.mxu0 0.0
        %525 = vmatprep.subr.mxu0 0.0
        %526 = vmatpush1.msra.mxu0 0.0
        %527 = vmatprep.subr.mxu0 0.0
        %528 = vmatpush1.msra.mxu0 0.0
        %529 = vmatprep.subr.mxu0 0.0
        %530 = vmatpush1.msra.mxu0 0.0
        %531 = vmatprep.subr.mxu0 0.0
        %532 = vmatpush1.msra.mxu0 0.0
        %533 = vmatprep.subr.mxu0 0.0
        %534 = vmatpush1.msra.mxu0 %v494
        %535 = vmatprep.subr.mxu0 0.0
        %536 = vmatpush1.msra.mxu0 %v493
        %537 = vmatprep.subr.mxu0 0.0
        %538 = vmatpush1.msra.mxu0 %v492
        %539 = vmatprep.subr.mxu0 0.0
        %540 = vmatpush1.msra.mxu0 %v491
        %541 = vmatprep.subr.mxu0 0.0
        %542 = vmatpush2.msra.mxu0 0.0
        %543 = vmatprep.subr.mxu0 0.0
        %544 = vmatpush2.msra.mxu0 0.0
        %545 = vmatprep.subr.mxu0 0.0
        %546 = vmatpush2.msra.mxu0 0.0
        %547 = vmatprep.subr.mxu0 0.0
        %548 = vmatpush2.msra.mxu0 0.0
        %549 = vmatprep.subr.mxu0 0.0
        %550 = vmatpush2.msra.mxu0 0.0
        %551 = vmatprep.subr.mxu0 0.0
        %552 = vmatpush2.msra.mxu0 0.0
        %553 = vmatprep.subr.mxu0 0.0
        %554 = vmatpush2.msra.mxu0 0.0
        %555 = vmatprep.subr.mxu0 0.0
        %556 = vmatpush2.msra.mxu0 0.0
        %557 = vmatprep.subr.mxu0 0.0
        %558 = vmatpush2.msra.mxu0 0.0
        %559 = vmatprep.subr.mxu0 0.0
        %560 = vmatpush2.msra.mxu0 0.0
        %561 = vmatprep.subr.mxu0 0.0
        %562 = vmatpush2.msra.mxu0 0.0
        %563 = vmatprep.subr.mxu0 0.0
        %564 = vmatpush2.msra.mxu0 0.0
        %565 = vmatprep.subr.mxu0 0.0
        %566 = vmatpush2.msra.mxu0 0.0
        %567 = vmatprep.subr.mxu0 0.0
        %568 = vmatpush2.msra.mxu0 0.0
        %569 = vmatprep.subr.mxu0 0.0
        %570 = vmatpush2.msra.mxu0 0.0
        %571 = vmatprep.subr.mxu0 0.0
        %572 = vmatpush2.msra.mxu0 0.0
        %573 = vmatprep.mubr.f32.mxu0 0.0
        %574 = vmatmul.mubr.f32.gmra.mxu0 %v504
        %v575 = vpop.f32.mrf.mxu0
        %v576 = vadd.f32 %v501, %v575
        %v577 = vpop.f32.mrf.mxu0
        %578 = vmatprep.mubr.f32.mxu0 0.0
        %579 = vmatmul.mubr.f32.gmra.mxu0 %v507
        %v580 = vpop.f32.mrf.mxu0
        %v581 = vadd.f32 %v501, %v580
        %v582 = vpop.f32.mrf.mxu0
        %583 = vdwg.mxu0
        %v584 = vmax.f32 %v576, 0.0
        %v585 = vmax.f32 %v581, 0.0
        %v586 = vld [vmem:[%s5] sm:$0x1]
        %v588 = vlaneseq
        %v589 = vshrl.u32 %v588, 7
        %v590 = vsub.s32 0, %v589
        %v591 = vrot.slane %v586, %v590
        %v593 = vmul.f32 %v584, %v591
        %v594 = vmul.f32 %v585, %v591
        %v595 = vsel %vm312, %v593, 0.0
        %596 = vadd.xlane.f32.xlu0 %v595
        %v597 = vpop.xlane.xlu0 %596
        %v598 = vsel %vm312, %v594, 0.0
        %599 = vadd.xlane.f32.xlu0 %v598
        %v600 = vpop.xlane.xlu0 %599
        %v601 = vld [vmem:[#allocation2] sm:$0x1]
        %v603 = vlaneseq
        %v604 = vshrl.u32 %v603, 7
        %v605 = vsub.s32 0, %v604
        %v606 = vrot.slane %v601, %v605
        %v608 = vadd.f32 %v597, %v606
        %v609 = vadd.f32 %v600, %v606
        %vm610 = vcmask 7168
        %611 = vst.msk [vmem:[%s297] sm:$0xff] %vm610, %v608
        %612 = vst.msk [vmem:[%s297 + $0x8] sm:$0xff] %vm610, %v609
        %s613 = smul.u32 2, %s21
        %p614 = scmp.lt.s32.totalorder %s613, 5
        %s615 = scalar_select %p614, %s613, 5
        %s616 = smul.addr %s615, 8
        %s617 = scalar_lea.vmem %s7, %s616
        // Predicated region
        $region53: #{tpu_custom_call.1} parent=47 // pred_check
          %p618 = pneg %p191
        $region54: #{tpu_custom_call.1} parent=47 // pred_check_branch
          %620 = sbr.rel (%p618) target = $region56
        $region55: #{tpu_custom_call.1} parent=47 // pred_region
          %s621 = smul.u32 2, %s21
        $region56: #{tpu_custom_call.1} parent=47 // pred_fallthru
          _
      $region48: #{tpu_custom_call.1} parent=5 // pred_fallthru
        _
      %p622 = scmp.le.s32.totalorder 2, %s16
      // Predicated region
      $region57: #{tpu_custom_call.1} parent=5 // pred_check
        %p623 = pneg %p622
      $region58: #{tpu_custom_call.1} parent=5 // pred_check_branch
        %625 = sbr.rel (%p623) target = $region60
      $region59: #{tpu_custom_call.1} parent=5 // pred_region
        %s626 = ssub.s32 %s16, 2
        // Predicated region
        $region61: #{tpu_custom_call.1} parent=59 // pred_check
          %p627 = pneg %p197
        $region62: #{tpu_custom_call.1} parent=59 // pred_check_branch
          %629 = sbr.rel (%p627) target = $region64
        $region63: #{tpu_custom_call.1} parent=59 // pred_region
          %s630 = smul.u32 2, %s22
          %p631 = scmp.lt.s32.totalorder %s630, 5
          %s632 = scalar_select %p631, %s630, 5
          %s633 = smul.addr %s632, 8
          %s634 = scalar_lea.vmem %s7, %s633
        $region64: #{tpu_custom_call.1} parent=59 // pred_fallthru
          _
      $region60: #{tpu_custom_call.1} parent=5 // pred_fallthru
        _
    $region6: #{tpu_custom_call.1} parent=1 // loop_footer
      %s20 = sadd.s32 1, %s16
    $region7: #{tpu_custom_call.1} parent=1 // loop_footer_branch
      %15 = sbr.rel target = $region3
    $region8: #{tpu_custom_call.1} parent=1 // loop_exit
      _
    %635 = vsyncpa [#allocation4], 1
    %s636 = scalar_lea.sflag [#allocation4], 1
    %637 = vsyncpa %s636, 1

</llo_original>
